<compile_context>
chip_gen: v7x
topology: tpu7x:2x2x1
jax: 0.10.0
libtpu: 0.0.40
codegen_flags: <defaults>
</compile_context>

<pallas_src>
import jax
import jax.numpy as jnp
from jax.experimental import pallas as pl
from jax.experimental.pallas import tpu as pltpu

LANE_TILE = 2048  # batch-lane tile width once N grows; weights stay resident


def mlp_kernel(xt_ref, w1_ref, b1_ref, w2_ref, b2_ref, w3_ref, b3_ref, o_ref):
    xt = xt_ref[...]          # (F, T)  -- batch in the lane dim, T % 128 == 0
    w1 = w1_ref[...]          # (H, F), F == 2

    # ---- layer 1 on the VPU: K=2 contraction as two broadcast FMAs ----
    # (H,1)*(1,T) + (H,1)*(1,T) -> (H, T); avoids an MXU push/pop for K=2.
    h1 = w1[:, 0:1] * xt[0:1, :] + w1[:, 1:2] * xt[1:2, :]
    h1 = jnp.maximum(h1 + b1_ref[...], 0.0)                       # (H, T)

    # ---- layer 2 on the MXU (f32 accumulation) ----
    h2 = jnp.dot(w2_ref[...], h1, preferred_element_type=jnp.float32)
    h2 = jnp.maximum(h2 + b2_ref[...], 0.0)                       # (H, T)

    # ---- output layer on the MXU (no activation) ----
    out = jnp.dot(w3_ref[...], h2, preferred_element_type=jnp.float32)
    o_ref[...] = (out + b3_ref[...]).astype(o_ref.dtype)          # (O, T)


def _mlp_lane_dense(xt, params):
    """xt: (F, N_pad) with N_pad a multiple of 128.  Returns (O, N_pad)."""
    f, n_pad = xt.shape
    h = params["w2"].shape[0]
    o = params["w3"].shape[0]
    t = min(n_pad, LANE_TILE)
    grid = (n_pad // t,)

    # Advisory cost for XLA's scheduler around the custom call.
    flops = 2 * n_pad * (f * h + h * h + h * o)
    bytes_accessed = 4 * (
        xt.size + o * n_pad
        + params["w1"].size + params["b1"].size
        + params["w2"].size + params["b2"].size
        + params["w3"].size + params["b3"].size
    )

    def weight_spec(shape):
        # Full array, constant index map -> stays VMEM-resident across tiles.
        return pl.BlockSpec(shape, lambda i: (0, 0))

    return pl.pallas_call(
        mlp_kernel,
        out_shape=jax.ShapeDtypeStruct((o, n_pad), jnp.float32),
        grid=grid,
        in_specs=[
            pl.BlockSpec((f, t), lambda i: (0, i)),   # x^T batch tile
            weight_spec((h, f)), weight_spec((h, 1)),
            weight_spec((h, h)), weight_spec((h, 1)),
            weight_spec((o, h)), weight_spec((o, 1)),
        ],
        out_specs=pl.BlockSpec((o, t), lambda i: (0, i)),
        compiler_params=pltpu.CompilerParams(
            dimension_semantics=("parallel",)),       # v7x: shard tiles on both TCs
        cost_estimate=pl.CostEstimate(
            flops=flops, transcendentals=0, bytes_accessed=bytes_accessed),
    )(
        xt,
        params["w1"], params["b1"],
        params["w2"], params["b2"],
        params["w3"], params["b3"],
    )


@jax.jit
def net_forward(x, params):
    """x: (N, F) batch-major (torch convention).  Returns (N, n_output).

    Single jitted executable: padding, the tiny input/output layout ops and
    the Pallas kernel are all fused into one device dispatch.
    """
    n = x.shape[0]
    n_pad = max(128, ((n + 127) // 128) * 128)
    if n_pad != n:
        x = jnp.concatenate(
            [x, jnp.zeros((n_pad - n, x.shape[1]), x.dtype)], axis=0)
    xt = x.T                                  # (F, N_pad), ~2 KB, fused under jit
    out_t = _mlp_lane_dense(xt, params)       # (O, N_pad) lane-dense slab
    return out_t[:, :n].T                     # back to (N, n_output); fuses under jit


def init_params(key, n_feature, n_hidden, n_output):
    """Deterministic init mimicking torch.nn.Linear default (uniform +/- 1/sqrt(fan_in)).

    Stored once in the layout the kernel consumes: W (out, in), b (out, 1).
    """
    ks = jax.random.split(key, 6)

    def lin(kw, kb, fan_in, fan_out):
        bound = 1.0 / jnp.sqrt(fan_in)
        w = jax.random.uniform(kw, (fan_out, fan_in), jnp.float32, -bound, bound)
        b = jax.random.uniform(kb, (fan_out, 1), jnp.float32, -bound, bound)
        return w, b

    w1, b1 = lin(ks[0], ks[1], n_feature, n_hidden)
    w2, b2 = lin(ks[2], ks[3], n_hidden, n_hidden)
    w3, b3 = lin(ks[4], ks[5], n_hidden, n_output)
    return {"w1": w1, "b1": b1, "w2": w2, "b2": b2, "w3": w3, "b3": b3}


if __name__ == "__main__":
    key = jax.random.PRNGKey(0)
    k_data0, k_data1, k_param = jax.random.split(key, 3)

    # Reproduce the synthetic classification data from the script:
    # x0 ~ N(+2, 1), x1 ~ N(-2, 1), each (100, 2), concatenated -> (200, 2).
    n_data = jnp.ones((100, 2), jnp.float32)
    x0 = 2.0 * n_data + jax.random.normal(k_data0, (100, 2), jnp.float32)
    x1 = -2.0 * n_data + jax.random.normal(k_data1, (100, 2), jnp.float32)
    x = jnp.concatenate([x0, x1], axis=0).astype(jnp.float32)  # (200, 2)

    n_feature, n_hidden, n_output = 2, 32, 2
    params = init_params(k_param, n_feature, n_hidden, n_output)

    out = net_forward(x, params)
    jax.block_until_ready(out)

    # Pure-JAX reference check (standard batch-major formulation).
    h1 = jnp.maximum(x @ params["w1"].T + params["b1"].T, 0.0)
    h2 = jnp.maximum(h1 @ params["w2"].T + params["b2"].T, 0.0)
    ref = h2 @ params["w3"].T + params["b3"].T
    assert out.shape == (200, n_output)
    assert jnp.allclose(out, ref, atol=1e-5, rtol=1e-5)

    print("KERNEL_OK")
</pallas_src>

<mosaic_0001>
module attributes {stable_mosaic.version = 11 : i64} {
  func.func @mlp_kernel(%arg0: i32, %arg1: memref<2x256xf32, #tpu.memory_space<vmem>>, %arg2: memref<32x2xf32, #tpu.memory_space<vmem>>, %arg3: memref<32x1xf32, #tpu.memory_space<vmem>>, %arg4: memref<32x32xf32, #tpu.memory_space<vmem>>, %arg5: memref<32x1xf32, #tpu.memory_space<vmem>>, %arg6: memref<2x32xf32, #tpu.memory_space<vmem>>, %arg7: memref<2x1xf32, #tpu.memory_space<vmem>>, %arg8: memref<2x256xf32, #tpu.memory_space<vmem>>) attributes {dimension_semantics = [#tpu.dimension_semantics<parallel>], iteration_bounds = array<i64: 1>, scalar_prefetch = 0 : i64, scratch_operands = 0 : i64, tpu.core_type = #tpu.core_type<tc>, window_params = [{transform_indices = @transform_0, window_bounds = array<i64: 2, 256>}, {pipeline_mode = #tpu.pipeline_mode<synchronous>, transform_indices = @transform_1, window_bounds = array<i64: 32, 2>}, {pipeline_mode = #tpu.pipeline_mode<synchronous>, transform_indices = @transform_2, window_bounds = array<i64: 32, 1>}, {pipeline_mode = #tpu.pipeline_mode<synchronous>, transform_indices = @transform_3, window_bounds = array<i64: 32, 32>}, {pipeline_mode = #tpu.pipeline_mode<synchronous>, transform_indices = @transform_4, window_bounds = array<i64: 32, 1>}, {pipeline_mode = #tpu.pipeline_mode<synchronous>, transform_indices = @transform_5, window_bounds = array<i64: 2, 32>}, {pipeline_mode = #tpu.pipeline_mode<synchronous>, transform_indices = @transform_6, window_bounds = array<i64: 2, 1>}, {transform_indices = @transform_7, window_bounds = array<i64: 2, 256>}]} {
    %c0 = arith.constant 0 : index
    %c0_0 = arith.constant 0 : index
    %0 = vector.load %arg1[%c0, %c0_0] : memref<2x256xf32, #tpu.memory_space<vmem>>, vector<2x256xf32>
    %c0_1 = arith.constant 0 : index
    %c0_2 = arith.constant 0 : index
    %1 = vector.load %arg2[%c0_1, %c0_2] : memref<32x2xf32, #tpu.memory_space<vmem>>, vector<32x2xf32>
    %2 = vector.extract_strided_slice %1 {offsets = [0, 0], sizes = [32, 1], strides = [1, 1]} : vector<32x2xf32> to vector<32x1xf32>
    %3 = vector.extract_strided_slice %0 {offsets = [0, 0], sizes = [1, 256], strides = [1, 1]} : vector<2x256xf32> to vector<1x256xf32>
    %4 = vector.broadcast %2 : vector<32x1xf32> to vector<32x256xf32>
    %5 = vector.broadcast %3 : vector<1x256xf32> to vector<32x256xf32>
    %6 = arith.mulf %4, %5 : vector<32x256xf32>
    %7 = vector.extract_strided_slice %1 {offsets = [0, 1], sizes = [32, 1], strides = [1, 1]} : vector<32x2xf32> to vector<32x1xf32>
    %8 = vector.extract_strided_slice %0 {offsets = [1, 0], sizes = [1, 256], strides = [1, 1]} : vector<2x256xf32> to vector<1x256xf32>
    %9 = vector.broadcast %7 : vector<32x1xf32> to vector<32x256xf32>
    %10 = vector.broadcast %8 : vector<1x256xf32> to vector<32x256xf32>
    %11 = arith.mulf %9, %10 : vector<32x256xf32>
    %12 = arith.addf %6, %11 : vector<32x256xf32>
    %c0_3 = arith.constant 0 : index
    %c0_4 = arith.constant 0 : index
    %13 = vector.load %arg3[%c0_3, %c0_4] : memref<32x1xf32, #tpu.memory_space<vmem>>, vector<32x1xf32>
    %14 = vector.broadcast %13 : vector<32x1xf32> to vector<32x256xf32>
    %15 = arith.addf %12, %14 : vector<32x256xf32>
    %cst = arith.constant 0.000000e+00 : f32
    %16 = vector.broadcast %cst : f32 to vector<32x256xf32>
    %17 = arith.maximumf %15, %16 : vector<32x256xf32>
    %c0_5 = arith.constant 0 : index
    %c0_6 = arith.constant 0 : index
    %18 = vector.load %arg4[%c0_5, %c0_6] : memref<32x32xf32, #tpu.memory_space<vmem>>, vector<32x32xf32>
    %cst_7 = arith.constant dense<0.000000e+00> : vector<32x256xf32>
    %19 = tpu.matmul %18, %17, %cst_7 {dimension_numbers = #tpu.dot_dimension_numbers<[1], [0], [0], [1], [0, 0, 1, 1], [], []>} : vector<32x32xf32>, vector<32x256xf32>, vector<32x256xf32> -> vector<32x256xf32>
    %c0_8 = arith.constant 0 : index
    %c0_9 = arith.constant 0 : index
    %20 = vector.load %arg5[%c0_8, %c0_9] : memref<32x1xf32, #tpu.memory_space<vmem>>, vector<32x1xf32>
    %21 = vector.broadcast %20 : vector<32x1xf32> to vector<32x256xf32>
    %22 = arith.addf %19, %21 : vector<32x256xf32>
    %cst_10 = arith.constant 0.000000e+00 : f32
    %23 = vector.broadcast %cst_10 : f32 to vector<32x256xf32>
    %24 = arith.maximumf %22, %23 : vector<32x256xf32>
    %c0_11 = arith.constant 0 : index
    %c0_12 = arith.constant 0 : index
    %25 = vector.load %arg6[%c0_11, %c0_12] : memref<2x32xf32, #tpu.memory_space<vmem>>, vector<2x32xf32>
    %cst_13 = arith.constant dense<0.000000e+00> : vector<2x256xf32>
    %26 = tpu.matmul %25, %24, %cst_13 {dimension_numbers = #tpu.dot_dimension_numbers<[1], [0], [0], [1], [0, 0, 1, 1], [], []>} : vector<2x32xf32>, vector<32x256xf32>, vector<2x256xf32> -> vector<2x256xf32>
    %c0_14 = arith.constant 0 : index
    %c0_15 = arith.constant 0 : index
    %27 = vector.load %arg7[%c0_14, %c0_15] : memref<2x1xf32, #tpu.memory_space<vmem>>, vector<2x1xf32>
    %28 = vector.broadcast %27 : vector<2x1xf32> to vector<2x256xf32>
    %29 = arith.addf %26, %28 : vector<2x256xf32>
    %c0_16 = arith.constant 0 : index
    %c0_17 = arith.constant 0 : index
    %30 = vector.load %arg8[%c0_16, %c0_17] : memref<2x256xf32, #tpu.memory_space<vmem>>, vector<2x256xf32>
    tpu.vector_store %arg8[%c0_16, %c0_17], %29 {strides = array<i32>} : memref<2x256xf32, #tpu.memory_space<vmem>>, vector<2x256xf32>,
    return
  }
  func.func @transform_0(%arg0: i32) -> (i32, i32) {
    %c0_i32 = arith.constant 0 : i32
    %c0_i32_0 = arith.constant 0 : i32
    return %c0_i32, %arg0 : i32, i32
  }
  func.func @transform_1(%arg0: i32) -> (i32, i32) {
    %c0_i32 = arith.constant 0 : i32
    %c0_i32_0 = arith.constant 0 : i32
    %c0_i32_1 = arith.constant 0 : i32
    return %c0_i32, %c0_i32_0 : i32, i32
  }
  func.func @transform_2(%arg0: i32) -> (i32, i32) {
    %c0_i32 = arith.constant 0 : i32
    %c0_i32_0 = arith.constant 0 : i32
    %c0_i32_1 = arith.constant 0 : i32
    return %c0_i32, %c0_i32_0 : i32, i32
  }
  func.func @transform_3(%arg0: i32) -> (i32, i32) {
    %c0_i32 = arith.constant 0 : i32
    %c0_i32_0 = arith.constant 0 : i32
    %c0_i32_1 = arith.constant 0 : i32
    return %c0_i32, %c0_i32_0 : i32, i32
  }
  func.func @transform_4(%arg0: i32) -> (i32, i32) {
    %c0_i32 = arith.constant 0 : i32
    %c0_i32_0 = arith.constant 0 : i32
    %c0_i32_1 = arith.constant 0 : i32
    return %c0_i32, %c0_i32_0 : i32, i32
  }
  func.func @transform_5(%arg0: i32) -> (i32, i32) {
    %c0_i32 = arith.constant 0 : i32
    %c0_i32_0 = arith.constant 0 : i32
    %c0_i32_1 = arith.constant 0 : i32
    return %c0_i32, %c0_i32_0 : i32, i32
  }
  func.func @transform_6(%arg0: i32) -> (i32, i32) {
    %c0_i32 = arith.constant 0 : i32
    %c0_i32_0 = arith.constant 0 : i32
    %c0_i32_1 = arith.constant 0 : i32
    return %c0_i32, %c0_i32_0 : i32, i32
  }
  func.func @transform_7(%arg0: i32) -> (i32, i32) {
    %c0_i32 = arith.constant 0 : i32
    %c0_i32_0 = arith.constant 0 : i32
    return %c0_i32, %arg0 : i32, i32
  }
}

</mosaic_0001>

<llo_original>
// kernel: net_forward.1
$region0: #{net_forward.1}
  #allocation0 [shape = 'u32[]', space=smem, size = 0x4, offset = 0x4, fixed_abs, tag = 'smem constant byte address 0x4 - core index']
  #allocation1 [shape = 'u32[144,128]{1,0:T(1,128)}', space=vmem, size = 0x12000, scoped, tag = 'internal scratch']
  %s0 = inlined_call_operand.vmem [shape: f32[2,256], index: 0, kind: input, shape index: {}]
  %s1 = inlined_call_operand.vmem [shape: f32[32,2], index: 1, kind: input, shape index: {}]
  %s2 = inlined_call_operand.vmem [shape: f32[32,1], index: 2, kind: input, shape index: {}]
  %s3 = inlined_call_operand.vmem [shape: f32[32,32], index: 3, kind: input, shape index: {}]
  %s4 = inlined_call_operand.vmem [shape: f32[32,1], index: 4, kind: input, shape index: {}]
  %s5 = inlined_call_operand.vmem [shape: f32[2,32], index: 5, kind: input, shape index: {}]
  %s6 = inlined_call_operand.vmem [shape: f32[2,1], index: 6, kind: input, shape index: {}]
  %s7 = inlined_call_operand.vmem [shape: f32[2,256], index: 7, kind: output, shape index: {}]
  %s8 = sld [smem:[#allocation0]]
  $region38: #{net_forward.1} parent=0
    _
  %s10 = ssub.s32 1, %s8
  %s11 = scalar_select 0, %s10, %s8
  // Predicated region
  $region2: #{net_forward.1} parent=0 // pred_check
    _
  $region3: #{net_forward.1} parent=0 // pred_check_branch
    %13 = sbr.rel (0) target = $region5
  $region4: #{net_forward.1} parent=0 // pred_region
    _
  $region5: #{net_forward.1} parent=0 // pred_fallthru
    _
  // Predicated region
  $region6: #{net_forward.1} parent=0 // pred_check
    _
  $region7: #{net_forward.1} parent=0 // pred_check_branch
    %15 = sbr.rel (0) target = $region9
  $region8: #{net_forward.1} parent=0 // pred_region
    _
  $region9: #{net_forward.1} parent=0 // pred_fallthru
    _
  // Predicated region
  $region10: #{net_forward.1} parent=0 // pred_check
    _
  $region11: #{net_forward.1} parent=0 // pred_check_branch
    %17 = sbr.rel (0) target = $region13
  $region12: #{net_forward.1} parent=0 // pred_region
    _
  $region13: #{net_forward.1} parent=0 // pred_fallthru
    _
  // Predicated region
  $region14: #{net_forward.1} parent=0 // pred_check
    _
  $region15: #{net_forward.1} parent=0 // pred_check_branch
    %19 = sbr.rel (0) target = $region17
  $region16: #{net_forward.1} parent=0 // pred_region
    _
  $region17: #{net_forward.1} parent=0 // pred_fallthru
    _
  // Predicated region
  $region18: #{net_forward.1} parent=0 // pred_check
    _
  $region19: #{net_forward.1} parent=0 // pred_check_branch
    %21 = sbr.rel (0) target = $region21
  $region20: #{net_forward.1} parent=0 // pred_region
    _
  $region21: #{net_forward.1} parent=0 // pred_fallthru
    _
  // Predicated region
  $region22: #{net_forward.1} parent=0 // pred_check
    _
  $region23: #{net_forward.1} parent=0 // pred_check_branch
    %23 = sbr.rel (0) target = $region25
  $region24: #{net_forward.1} parent=0 // pred_region
    _
  $region25: #{net_forward.1} parent=0 // pred_fallthru
    _
  // Predicated region
  $region26: #{net_forward.1} parent=0 // pred_check
    _
  $region27: #{net_forward.1} parent=0 // pred_check_branch
    %25 = sbr.rel (0) target = $region29
  $region28: #{net_forward.1} parent=0 // pred_region
    _
  $region29: #{net_forward.1} parent=0 // pred_fallthru
    _
  %v26 = vld [vmem:[%s0] sm:$0xf]
  %v27 = vld [vmem:[%s1] sm:$0xff]
  %v28 = vld [vmem:[%s1 + $0x8] sm:$0xff]
  %v29 = vld [vmem:[%s1 + $0x10] sm:$0xff]
  %v30 = vld [vmem:[%s1 + $0x18] sm:$0xff]
  %32 = vset.pattern.permute.xlu0 0
  %33 = vperm.xlu0 %32, %v27
  %v34 = vpop.permute.xlu0 %33
  %37 = vset.pattern.permute.xlu0 0
  %38 = vperm.xlu0 %37, %v28
  %v39 = vpop.permute.xlu0 %38
  %42 = vset.pattern.permute.xlu0 0
  %43 = vperm.xlu0 %42, %v29
  %v44 = vpop.permute.xlu0 %43
  %47 = vset.pattern.permute.xlu0 0
  %48 = vperm.xlu0 %47, %v30
  %v49 = vpop.permute.xlu0 %48
  %v52 = vlaneseq
  %v53 = vshrl.u32 %v52, 7
  %v54 = vsub.s32 0, %v53
  %v55 = vrot.slane %v26, %v54
  %v56 = vlaneseq
  %v57 = vshrl.u32 %v56, 7
  %v58 = vsub.s32 2, %v57
  %v59 = vrot.slane %v26, %v58
  %v62 = vlaneseq
  %v63 = vshrl.u32 %v62, 7
  %v64 = vsub.s32 0, %v63
  %v65 = vrot.slane %v55, %v64
  %v66 = vlaneseq
  %v67 = vshrl.u32 %v66, 7
  %v68 = vsub.s32 0, %v67
  %v69 = vrot.slane %v59, %v68
  %v70 = vmul.f32 %v34, %v65
  %v71 = vmul.f32 %v34, %v69
  %v72 = vmul.f32 %v39, %v65
  %v73 = vmul.f32 %v39, %v69
  %v74 = vmul.f32 %v44, %v65
  %v75 = vmul.f32 %v44, %v69
  %v76 = vmul.f32 %v49, %v65
  %v77 = vmul.f32 %v49, %v69
  %78 = vset.pattern.permute.xlu0 1
  %79 = vperm.xlu0 %78, %v27
  %v80 = vpop.permute.xlu0 %79
  %82 = vset.pattern.permute.xlu0 1
  %83 = vperm.xlu0 %82, %v28
  %v84 = vpop.permute.xlu0 %83
  %86 = vset.pattern.permute.xlu0 1
  %87 = vperm.xlu0 %86, %v29
  %v88 = vpop.permute.xlu0 %87
  %90 = vset.pattern.permute.xlu0 1
  %91 = vperm.xlu0 %90, %v30
  %v92 = vpop.permute.xlu0 %91
  %v94 = vlaneseq
  %v95 = vshrl.u32 %v94, 7
  %v96 = vsub.s32 1, %v95
  %v97 = vrot.slane %v26, %v96
  %v98 = vlaneseq
  %v99 = vshrl.u32 %v98, 7
  %v100 = vsub.s32 3, %v99
  %v101 = vrot.slane %v26, %v100
  %v104 = vlaneseq
  %v105 = vshrl.u32 %v104, 7
  %v106 = vsub.s32 1, %v105
  %v107 = vrot.slane %v97, %v106
  %v108 = vlaneseq
  %v109 = vshrl.u32 %v108, 7
  %v110 = vsub.s32 1, %v109
  %v111 = vrot.slane %v101, %v110
  %v112 = vmul.f32 %v80, %v107
  %v113 = vmul.f32 %v80, %v111
  %v114 = vmul.f32 %v84, %v107
  %v115 = vmul.f32 %v84, %v111
  %v116 = vmul.f32 %v88, %v107
  %v117 = vmul.f32 %v88, %v111
  %v118 = vmul.f32 %v92, %v107
  %v119 = vmul.f32 %v92, %v111
  %v120 = vadd.f32 %v70, %v112
  %v121 = vadd.f32 %v71, %v113
  %v122 = vadd.f32 %v72, %v114
  %v123 = vadd.f32 %v73, %v115
  %v124 = vadd.f32 %v74, %v116
  %v125 = vadd.f32 %v75, %v117
  %v126 = vadd.f32 %v76, %v118
  %v127 = vadd.f32 %v77, %v119
  %v128 = vld [vmem:[%s2] sm:$0xff]
  %v129 = vld [vmem:[%s2 + $0x8] sm:$0xff]
  %v130 = vld [vmem:[%s2 + $0x10] sm:$0xff]
  %v131 = vld [vmem:[%s2 + $0x18] sm:$0xff]
  %133 = vset.pattern.permute.xlu0 0
  %134 = vperm.xlu0 %133, %v128
  %v135 = vpop.permute.xlu0 %134
  %138 = vset.pattern.permute.xlu0 0
  %139 = vperm.xlu0 %138, %v129
  %v140 = vpop.permute.xlu0 %139
  %143 = vset.pattern.permute.xlu0 0
  %144 = vperm.xlu0 %143, %v130
  %v145 = vpop.permute.xlu0 %144
  %148 = vset.pattern.permute.xlu0 0
  %149 = vperm.xlu0 %148, %v131
  %v150 = vpop.permute.xlu0 %149
  %v152 = vadd.f32 %v120, %v135
  %v153 = vadd.f32 %v121, %v135
  %v154 = vadd.f32 %v122, %v140
  %v155 = vadd.f32 %v123, %v140
  %v156 = vadd.f32 %v124, %v145
  %v157 = vadd.f32 %v125, %v145
  %v158 = vadd.f32 %v126, %v150
  %v159 = vadd.f32 %v127, %v150
  %v160 = vmax.f32 %v152, 0.0
  %v161 = vmax.f32 %v153, 0.0
  %v162 = vmax.f32 %v154, 0.0
  %v163 = vmax.f32 %v155, 0.0
  %v164 = vmax.f32 %v156, 0.0
  %v165 = vmax.f32 %v157, 0.0
  %v166 = vmax.f32 %v158, 0.0
  %v167 = vmax.f32 %v159, 0.0
  %v168 = vld [vmem:[%s3] sm:$0xff]
  %v169 = vld [vmem:[%s3 + $0x8] sm:$0xff]
  %v170 = vld [vmem:[%s3 + $0x10] sm:$0xff]
  %v171 = vld [vmem:[%s3 + $0x18] sm:$0xff]
  %v172 = vld [vmem:[%s4] sm:$0xff]
  %v173 = vld [vmem:[%s4 + $0x8] sm:$0xff]
  %v174 = vld [vmem:[%s4 + $0x10] sm:$0xff]
  %v175 = vld [vmem:[%s4 + $0x18] sm:$0xff]
  %177 = vset.pattern.permute.xlu0 0
  %178 = vperm.xlu0 %177, %v172
  %v179 = vpop.permute.xlu0 %178
  %182 = vset.pattern.permute.xlu0 0
  %183 = vperm.xlu0 %182, %v173
  %v184 = vpop.permute.xlu0 %183
  %187 = vset.pattern.permute.xlu0 0
  %188 = vperm.xlu0 %187, %v174
  %v189 = vpop.permute.xlu0 %188
  %192 = vset.pattern.permute.xlu0 0
  %193 = vperm.xlu0 %192, %v175
  %v194 = vpop.permute.xlu0 %193
  %vm196 = vcmask 261120
  %v198 = vsel %vm196, %v168, 0
  %v201 = vsel %vm196, %v169, 0
  %v204 = vsel %vm196, %v170, 0
  %v207 = vsel %vm196, %v171, 0
  %209 = vmatprep.subr.mxu0 %v161
  %210 = vmatpush1.msra.mxu0 %v160
  %211 = vmatprep.subr.mxu0 %v163
  %212 = vmatpush1.msra.mxu0 %v162
  %213 = vmatprep.subr.mxu0 %v165
  %214 = vmatpush1.msra.mxu0 %v164
  %215 = vmatprep.subr.mxu0 %v167
  %216 = vmatpush1.msra.mxu0 %v166
  %217 = vmatprep.subr.mxu0 0.0
  %218 = vmatpush1.msra.mxu0 0.0
  %219 = vmatprep.subr.mxu0 0.0
  %220 = vmatpush1.msra.mxu0 0.0
  %221 = vmatprep.subr.mxu0 0.0
  %222 = vmatpush1.msra.mxu0 0.0
  %223 = vmatprep.subr.mxu0 0.0
  %224 = vmatpush1.msra.mxu0 0.0
  %225 = vmatprep.subr.mxu0 0.0
  %226 = vmatpush1.msra.mxu0 0.0
  %227 = vmatprep.subr.mxu0 0.0
  %228 = vmatpush1.msra.mxu0 0.0
  %229 = vmatprep.subr.mxu0 0.0
  %230 = vmatpush1.msra.mxu0 0.0
  %231 = vmatprep.subr.mxu0 0.0
  %232 = vmatpush1.msra.mxu0 0.0
  %233 = vmatprep.subr.mxu0 0.0
  %234 = vmatpush1.msra.mxu0 0.0
  %235 = vmatprep.subr.mxu0 0.0
  %236 = vmatpush1.msra.mxu0 0.0
  %237 = vmatprep.subr.mxu0 0.0
  %238 = vmatpush1.msra.mxu0 0.0
  %239 = vmatprep.subr.mxu0 0.0
  %240 = vmatpush1.msra.mxu0 0.0
  %241 = vmatprep.subr.mxu0 0.0
  %242 = vmatpush1.msra.mxu0 0.0
  %243 = vmatprep.subr.mxu0 0.0
  %244 = vmatpush1.msra.mxu0 0.0
  %245 = vmatprep.subr.mxu0 0.0
  %246 = vmatpush1.msra.mxu0 0.0
  %247 = vmatprep.subr.mxu0 0.0
  %248 = vmatpush1.msra.mxu0 0.0
  %249 = vmatprep.subr.mxu0 0.0
  %250 = vmatpush1.msra.mxu0 0.0
  %251 = vmatprep.subr.mxu0 0.0
  %252 = vmatpush1.msra.mxu0 0.0
  %253 = vmatprep.subr.mxu0 0.0
  %254 = vmatpush1.msra.mxu0 0.0
  %255 = vmatprep.subr.mxu0 0.0
  %256 = vmatpush1.msra.mxu0 0.0
  %257 = vmatprep.subr.mxu0 0.0
  %258 = vmatpush1.msra.mxu0 0.0
  %259 = vmatprep.subr.mxu0 0.0
  %260 = vmatpush1.msra.mxu0 0.0
  %261 = vmatprep.subr.mxu0 0.0
  %262 = vmatpush1.msra.mxu0 0.0
  %263 = vmatprep.subr.mxu0 0.0
  %264 = vmatpush1.msra.mxu0 0.0
  %265 = vmatprep.subr.mxu0 0.0
  %266 = vmatpush1.msra.mxu0 0.0
  %267 = vmatprep.subr.mxu0 0.0
  %268 = vmatpush1.msra.mxu0 0.0
  %269 = vmatprep.subr.mxu0 0.0
  %270 = vmatpush1.msra.mxu0 0.0
  %271 = vmatprep.subr.mxu0 0.0
  %272 = vmatpush1.msra.mxu0 0.0
  %273 = vmatprep.mubr.f32.mxu0 0.0
  %274 = vmatmul.mubr.f32.gmra.mrb[0].mxu0 %v198
  %v275 = vpop.f32.mrb[0].mxu0
  %v276 = vadd.f32 %v179, %v275
  %v277 = vpop.f32.mrb[0].mxu0
  %v278 = vadd.f32 %v179, %v277
  %279 = vmatprep.mubr.f32.mxu0 0.0
  %280 = vmatmul.mubr.f32.gmra.mrb[0].mxu0 %v201
  %v281 = vpop.f32.mrb[0].mxu0
  %v282 = vadd.f32 %v184, %v281
  %v283 = vpop.f32.mrb[0].mxu0
  %v284 = vadd.f32 %v184, %v283
  %285 = vmatprep.mubr.f32.mxu0 0.0
  %286 = vmatmul.mubr.f32.gmra.mrb[0].mxu0 %v204
  %v287 = vpop.f32.mrb[0].mxu0
  %v288 = vadd.f32 %v189, %v287
  %v289 = vpop.f32.mrb[0].mxu0
  %v290 = vadd.f32 %v189, %v289
  %291 = vmatprep.mubr.f32.mxu0 0.0
  %292 = vmatmul.mubr.f32.gmra.mrb[0].mxu0 %v207
  %v293 = vpop.f32.mrb[0].mxu0
  %v294 = vadd.f32 %v194, %v293
  %v295 = vpop.f32.mrb[0].mxu0
  %v296 = vadd.f32 %v194, %v295
  %297 = vdwg.mxu0
  %v298 = vmax.f32 %v276, 0.0
  %v299 = vmax.f32 %v278, 0.0
  %v300 = vmax.f32 %v282, 0.0
  %v301 = vmax.f32 %v284, 0.0
  %v302 = vmax.f32 %v288, 0.0
  %v303 = vmax.f32 %v290, 0.0
  %v304 = vmax.f32 %v294, 0.0
  %v305 = vmax.f32 %v296, 0.0
  %v306 = vld [vmem:[%s5] sm:$0x3]
  %v307 = vld [vmem:[%s6] sm:$0x3]
  %309 = vset.pattern.permute.xlu0 0
  %310 = vperm.xlu0 %309, %v307
  %v311 = vpop.permute.xlu0 %310
  %v314 = vsel %vm196, %v306, 0
  %316 = vmatprep.subr.mxu0 %v299
  %317 = vmatpush1.msra.mxu0 %v298
  %318 = vmatprep.subr.mxu0 %v301
  %319 = vmatpush1.msra.mxu0 %v300
  %320 = vmatprep.subr.mxu0 %v303
  %321 = vmatpush1.msra.mxu0 %v302
  %322 = vmatprep.subr.mxu0 %v305
  %323 = vmatpush1.msra.mxu0 %v304
  %324 = vmatprep.subr.mxu0 0.0
  %325 = vmatpush1.msra.mxu0 0.0
  %326 = vmatprep.subr.mxu0 0.0
  %327 = vmatpush1.msra.mxu0 0.0
  %328 = vmatprep.subr.mxu0 0.0
  %329 = vmatpush1.msra.mxu0 0.0
  %330 = vmatprep.subr.mxu0 0.0
  %331 = vmatpush1.msra.mxu0 0.0
  %332 = vmatprep.subr.mxu0 0.0
  %333 = vmatpush1.msra.mxu0 0.0
  %334 = vmatprep.subr.mxu0 0.0
  %335 = vmatpush1.msra.mxu0 0.0
  %336 = vmatprep.subr.mxu0 0.0
  %337 = vmatpush1.msra.mxu0 0.0
  %338 = vmatprep.subr.mxu0 0.0
  %339 = vmatpush1.msra.mxu0 0.0
  %340 = vmatprep.subr.mxu0 0.0
  %341 = vmatpush1.msra.mxu0 0.0
  %342 = vmatprep.subr.mxu0 0.0
  %343 = vmatpush1.msra.mxu0 0.0
  %344 = vmatprep.subr.mxu0 0.0
  %345 = vmatpush1.msra.mxu0 0.0
  %346 = vmatprep.subr.mxu0 0.0
  %347 = vmatpush1.msra.mxu0 0.0
  %348 = vmatprep.subr.mxu0 0.0
  %349 = vmatpush1.msra.mxu0 0.0
  %350 = vmatprep.subr.mxu0 0.0
  %351 = vmatpush1.msra.mxu0 0.0
  %352 = vmatprep.subr.mxu0 0.0
  %353 = vmatpush1.msra.mxu0 0.0
  %354 = vmatprep.subr.mxu0 0.0
  %355 = vmatpush1.msra.mxu0 0.0
  %356 = vmatprep.subr.mxu0 0.0
  %357 = vmatpush1.msra.mxu0 0.0
  %358 = vmatprep.subr.mxu0 0.0
  %359 = vmatpush1.msra.mxu0 0.0
  %360 = vmatprep.subr.mxu0 0.0
  %361 = vmatpush1.msra.mxu0 0.0
  %362 = vmatprep.subr.mxu0 0.0
  %363 = vmatpush1.msra.mxu0 0.0
  %364 = vmatprep.subr.mxu0 0.0
  %365 = vmatpush1.msra.mxu0 0.0
  %366 = vmatprep.subr.mxu0 0.0
  %367 = vmatpush1.msra.mxu0 0.0
  %368 = vmatprep.subr.mxu0 0.0
  %369 = vmatpush1.msra.mxu0 0.0
  %370 = vmatprep.subr.mxu0 0.0
  %371 = vmatpush1.msra.mxu0 0.0
  %372 = vmatprep.subr.mxu0 0.0
  %373 = vmatpush1.msra.mxu0 0.0
  %374 = vmatprep.subr.mxu0 0.0
  %375 = vmatpush1.msra.mxu0 0.0
  %376 = vmatprep.subr.mxu0 0.0
  %377 = vmatpush1.msra.mxu0 0.0
  %378 = vmatprep.subr.mxu0 0.0
  %379 = vmatpush1.msra.mxu0 0.0
  %380 = vmatprep.mubr.f32.mxu0 0.0
  %381 = vmatmul.mubr.f32.gmra.mrb[0].mxu0 %v314
  %v382 = vpop.f32.mrb[0].mxu0
  %v383 = vadd.f32 %v311, %v382
  %v384 = vpop.f32.mrb[0].mxu0
  %v385 = vadd.f32 %v311, %v384
  %386 = vdwg.mxu0
  %v389 = vcombine.low %v383, %v385
  %v391 = vunpack.c.l.s4 1983009808
  %v392 = vunpack.c.0.s8 %v391
  %v393 = vlaneseq
  %v394 = vshrl.u32 %v393, 7
  %v395 = vsub.s32 %v392, %v394
  %v396 = vrot.slane %v389, %v395
  %398 = vst [vmem:[%s7] sm:$0xf] %v396
  // Predicated region
  $region30: #{net_forward.1} parent=0 // pred_check
    _
  $region31: #{net_forward.1} parent=0 // pred_check_branch
    %400 = sbr.rel (0) target = $region33
  $region32: #{net_forward.1} parent=0 // pred_region
    _
  $region33: #{net_forward.1} parent=0 // pred_fallthru
    _
  // Predicated region
  $region34: #{net_forward.1} parent=0 // pred_check
    _
  $region35: #{net_forward.1} parent=0 // pred_check_branch
    %402 = sbr.rel (0) target = $region37
  $region36: #{net_forward.1} parent=0 // pred_region
    _
  $region37: #{net_forward.1} parent=0 // pred_fallthru
    _

</llo_original>
